<compile_context>
chip_gen: v6e
topology: v6e:2x2x1
jax: 0.10.0
libtpu: 0.0.40
codegen_flags: <defaults>
</compile_context>

<pallas_src>
import math

import jax
import jax.numpy as jnp
from jax.experimental import pallas as pl
from jax.experimental.pallas import tpu as pltpu


def _dense_concat_kernel(a_ref, m_ref, w1a_ref, w1m_ref, b1_ref,
                         w2_ref, b2_ref, o_ref):
    """Fused fc1 -> ReLU -> fc2 -> ReLU on one (channels, block_t) tile.

    a_ref  : (Ca,   block_t)  audio channels x time (native NCL layout)
    m_ref  : (Cm,   block_t)  midi  channels x time
    w1a_ref: (Chid, Ca)       fc1 weight cols for the audio channels (transposed)
    w1m_ref: (Chid, Cm)       fc1 weight cols for the midi  channels (transposed)
    b1_ref : (Chid, 1)
    w2_ref : (Cout, Chid)     fc2 weight (transposed)
    b2_ref : (Cout, 1)
    o_ref  : (Cout, block_t)
    """
    # fc1 applied to cat([audio, midi], channel) without materializing the concat:
    #   W1ᵀ @ cat([a, m], 0) == W1[:Ca]ᵀ @ a + W1[Ca:]ᵀ @ m
    h = jnp.dot(w1a_ref[...], a_ref[...], preferred_element_type=jnp.float32)
    h = h + jnp.dot(w1m_ref[...], m_ref[...], preferred_element_type=jnp.float32)
    h = jnp.maximum(h + b1_ref[...], 0.0)
    # TODO(synk): Dropout(p=0.2) is identity at inference; a training-mode kernel
    # would draw a mask via pltpu.prng_seed + pltpu.stateful_bernoulli.
    y = jnp.dot(w2_ref[...], h, preferred_element_type=jnp.float32)
    y = jnp.maximum(y + b2_ref[...], 0.0)
    o_ref[...] = y.astype(o_ref.dtype)


def dense_concat(midi_embed, audio_embed, w1, b1, w2, b2):
    """Forward pass of DenseConcat.

    midi_embed : (N, Cm, T)    audio_embed : (N, Ca, T)   (PyTorch NCL layout)
    w1 : (Ca + Cm, Chid)   b1 : (Chid,)      (stored as PyTorch fc1.weight.T)
    w2 : (Chid, Cout)      b2 : (Cout,)      (stored as PyTorch fc2.weight.T)
    returns (N, Cout, T)
    """
    N, Ca, T = audio_embed.shape
    _, Cm, _ = midi_embed.shape
    Chid = w1.shape[1]
    Cout = w2.shape[1]
    dtype = audio_embed.dtype

    # Tiny, one-time weight transposes: the channels-major kernel multiplies
    # with the weight on the left (Wᵀ @ x).
    w1a_t = jnp.transpose(w1[:Ca])           # (Chid, Ca)  -> audio block of fc1
    w1m_t = jnp.transpose(w1[Ca:])           # (Chid, Cm)  -> midi  block of fc1
    w2_t = jnp.transpose(w2)                 # (Cout, Chid)
    b1c = b1.reshape(Chid, 1)
    b2c = b2.reshape(Cout, 1)

    # Time tiling: lane-dense 128-multiple tiles when T allows; otherwise take
    # the full time axis as a single block (valid since it equals the full dim).
    if T % 128 == 0:
        block_t = min(512, T)
        while T % block_t:
            block_t -= 128
    else:
        block_t = T
    grid_t = T // block_t

    out = pl.pallas_call(
        _dense_concat_kernel,
        out_shape=jax.ShapeDtypeStruct((N, Cout, T), dtype),
        grid_spec=pltpu.PrefetchScalarGridSpec(
            num_scalar_prefetch=0,
            grid=(N, grid_t),
            in_specs=[
                pl.BlockSpec((None, Ca, block_t), lambda n, t: (n, 0, t)),
                pl.BlockSpec((None, Cm, block_t), lambda n, t: (n, 0, t)),
                pl.BlockSpec((Chid, Ca), lambda n, t: (0, 0)),
                pl.BlockSpec((Chid, Cm), lambda n, t: (0, 0)),
                pl.BlockSpec((Chid, 1), lambda n, t: (0, 0)),
                pl.BlockSpec((Cout, Chid), lambda n, t: (0, 0)),
                pl.BlockSpec((Cout, 1), lambda n, t: (0, 0)),
            ],
            out_specs=pl.BlockSpec((None, Cout, block_t),
                                   lambda n, t: (n, 0, t)),
        ),
        compiler_params=pltpu.CompilerParams(
            dimension_semantics=("parallel", "parallel")),
    )(audio_embed, midi_embed, w1a_t, w1m_t, b1c, w2_t, b2c)
    return out


def init_linear(key, fan_in, fan_out):
    """nn.Linear default init (kaiming-uniform weight, uniform bias), stored as W.T."""
    kw, kb = jax.random.split(key)
    bound = 1.0 / math.sqrt(fan_in)
    w = jax.random.uniform(kw, (fan_in, fan_out), jnp.float32, -bound, bound)
    b = jax.random.uniform(kb, (fan_out,), jnp.float32, -bound, bound)
    return w, b


if __name__ == "__main__":
    # Small, module-consistent shapes.
    N, Ca, Cm, T = 2, 12, 12, 16
    Cin = Ca + Cm           # in_channels = 24
    Chid = 32               # intermediate_channels
    Cout = 16               # out_channels

    key = jax.random.PRNGKey(0)
    k_audio, k_midi, k1, k2 = jax.random.split(key, 4)
    audio_embed = jax.random.normal(k_audio, (N, Ca, T), jnp.float32)
    midi_embed = jax.random.normal(k_midi, (N, Cm, T), jnp.float32)
    w1, b1 = init_linear(k1, Cin, Chid)
    w2, b2 = init_linear(k2, Chid, Cout)

    out = jax.block_until_ready(
        dense_concat(midi_embed, audio_embed, w1, b1, w2, b2))
    assert out.shape == (N, Cout, T)

    # Pure-JAX reference (dropout is identity at inference).
    x = jnp.concatenate([audio_embed, midi_embed], axis=1)   # (N, Cin, T)
    x = jnp.transpose(x, (0, 2, 1))                          # (N, T, Cin)
    h = jnp.maximum(x @ w1 + b1, 0.0)
    r = jnp.maximum(h @ w2 + b2, 0.0)
    ref = jnp.transpose(r, (0, 2, 1))                        # (N, Cout, T)

    assert bool(jnp.all(jnp.isfinite(out)))
    assert jnp.allclose(out, ref, atol=1e-5, rtol=1e-5)
    print("KERNEL_OK")
</pallas_src>

<mosaic_0001>
module attributes {stable_mosaic.version = 11 : i64} {
  func.func @_dense_concat_kernel(%arg0: i32, %arg1: i32, %arg2: memref<1x12x16xf32, #tpu.memory_space<vmem>>, %arg3: memref<1x12x16xf32, #tpu.memory_space<vmem>>, %arg4: memref<32x12xf32, #tpu.memory_space<vmem>>, %arg5: memref<32x12xf32, #tpu.memory_space<vmem>>, %arg6: memref<32x1xf32, #tpu.memory_space<vmem>>, %arg7: memref<16x32xf32, #tpu.memory_space<vmem>>, %arg8: memref<16x1xf32, #tpu.memory_space<vmem>>, %arg9: memref<1x16x16xf32, #tpu.memory_space<vmem>>) attributes {dimension_semantics = [#tpu.dimension_semantics<parallel>, #tpu.dimension_semantics<parallel>], iteration_bounds = array<i64: 2, 1>, scalar_prefetch = 0 : i64, scratch_operands = 0 : i64, tpu.core_type = #tpu.core_type<tc>, window_params = [{transform_indices = @transform_0, window_bounds = array<i64: 1, 12, 16>}, {transform_indices = @transform_1, window_bounds = array<i64: 1, 12, 16>}, {pipeline_mode = #tpu.pipeline_mode<synchronous>, transform_indices = @transform_2, window_bounds = array<i64: 32, 12>}, {pipeline_mode = #tpu.pipeline_mode<synchronous>, transform_indices = @transform_3, window_bounds = array<i64: 32, 12>}, {pipeline_mode = #tpu.pipeline_mode<synchronous>, transform_indices = @transform_4, window_bounds = array<i64: 32, 1>}, {pipeline_mode = #tpu.pipeline_mode<synchronous>, transform_indices = @transform_5, window_bounds = array<i64: 16, 32>}, {pipeline_mode = #tpu.pipeline_mode<synchronous>, transform_indices = @transform_6, window_bounds = array<i64: 16, 1>}, {transform_indices = @transform_7, window_bounds = array<i64: 1, 16, 16>}]} {
    %c0 = arith.constant 0 : index
    %c0_0 = arith.constant 0 : index
    %0 = vector.load %arg4[%c0, %c0_0] : memref<32x12xf32, #tpu.memory_space<vmem>>, vector<32x12xf32>
    %c0_1 = arith.constant 0 : index
    %c0_2 = arith.constant 0 : index
    %c0_3 = arith.constant 0 : index
    %1 = vector.load %arg2[%c0_1, %c0_2, %c0_3] : memref<1x12x16xf32, #tpu.memory_space<vmem>>, vector<1x12x16xf32>
    %2 = vector.shape_cast %1 : vector<1x12x16xf32> to vector<12x16xf32>
    %cst = arith.constant dense<0.000000e+00> : vector<32x16xf32>
    %3 = tpu.matmul %0, %2, %cst {dimension_numbers = #tpu.dot_dimension_numbers<[1], [0], [0], [1], [0, 0, 1, 1], [], []>} : vector<32x12xf32>, vector<12x16xf32>, vector<32x16xf32> -> vector<32x16xf32>
    %c0_4 = arith.constant 0 : index
    %c0_5 = arith.constant 0 : index
    %4 = vector.load %arg5[%c0_4, %c0_5] : memref<32x12xf32, #tpu.memory_space<vmem>>, vector<32x12xf32>
    %c0_6 = arith.constant 0 : index
    %c0_7 = arith.constant 0 : index
    %c0_8 = arith.constant 0 : index
    %5 = vector.load %arg3[%c0_6, %c0_7, %c0_8] : memref<1x12x16xf32, #tpu.memory_space<vmem>>, vector<1x12x16xf32>
    %6 = vector.shape_cast %5 : vector<1x12x16xf32> to vector<12x16xf32>
    %cst_9 = arith.constant dense<0.000000e+00> : vector<32x16xf32>
    %7 = tpu.matmul %4, %6, %cst_9 {dimension_numbers = #tpu.dot_dimension_numbers<[1], [0], [0], [1], [0, 0, 1, 1], [], []>} : vector<32x12xf32>, vector<12x16xf32>, vector<32x16xf32> -> vector<32x16xf32>
    %8 = arith.addf %3, %7 : vector<32x16xf32>
    %c0_10 = arith.constant 0 : index
    %c0_11 = arith.constant 0 : index
    %9 = vector.load %arg6[%c0_10, %c0_11] : memref<32x1xf32, #tpu.memory_space<vmem>>, vector<32x1xf32>
    %10 = vector.broadcast %9 : vector<32x1xf32> to vector<32x16xf32>
    %11 = arith.addf %8, %10 : vector<32x16xf32>
    %cst_12 = arith.constant 0.000000e+00 : f32
    %12 = vector.broadcast %cst_12 : f32 to vector<32x16xf32>
    %13 = arith.maximumf %11, %12 : vector<32x16xf32>
    %c0_13 = arith.constant 0 : index
    %c0_14 = arith.constant 0 : index
    %14 = vector.load %arg7[%c0_13, %c0_14] : memref<16x32xf32, #tpu.memory_space<vmem>>, vector<16x32xf32>
    %cst_15 = arith.constant dense<0.000000e+00> : vector<16x16xf32>
    %15 = tpu.matmul %14, %13, %cst_15 {dimension_numbers = #tpu.dot_dimension_numbers<[1], [0], [0], [1], [0, 0, 1, 1], [], []>} : vector<16x32xf32>, vector<32x16xf32>, vector<16x16xf32> -> vector<16x16xf32>
    %c0_16 = arith.constant 0 : index
    %c0_17 = arith.constant 0 : index
    %16 = vector.load %arg8[%c0_16, %c0_17] : memref<16x1xf32, #tpu.memory_space<vmem>>, vector<16x1xf32>
    %17 = vector.broadcast %16 : vector<16x1xf32> to vector<16x16xf32>
    %18 = arith.addf %15, %17 : vector<16x16xf32>
    %cst_18 = arith.constant 0.000000e+00 : f32
    %19 = vector.broadcast %cst_18 : f32 to vector<16x16xf32>
    %20 = arith.maximumf %18, %19 : vector<16x16xf32>
    %c0_19 = arith.constant 0 : index
    %c0_20 = arith.constant 0 : index
    %c0_21 = arith.constant 0 : index
    %21 = vector.load %arg9[%c0_19, %c0_20, %c0_21] : memref<1x16x16xf32, #tpu.memory_space<vmem>>, vector<1x16x16xf32>
    %22 = vector.shape_cast %21 : vector<1x16x16xf32> to vector<16x16xf32>
    %23 = vector.shape_cast %20 : vector<16x16xf32> to vector<1x16x16xf32>
    tpu.vector_store %arg9[%c0_19, %c0_20, %c0_21], %23 {strides = array<i32>} : memref<1x16x16xf32, #tpu.memory_space<vmem>>, vector<1x16x16xf32>,
    return
  }
  func.func @transform_0(%arg0: i32, %arg1: i32) -> (i32, i32, i32) {
    %c0_i32 = arith.constant 0 : i32
    %c0_i32_0 = arith.constant 0 : i32
    return %arg0, %c0_i32, %arg1 : i32, i32, i32
  }
  func.func @transform_1(%arg0: i32, %arg1: i32) -> (i32, i32, i32) {
    %c0_i32 = arith.constant 0 : i32
    %c0_i32_0 = arith.constant 0 : i32
    return %arg0, %c0_i32, %arg1 : i32, i32, i32
  }
  func.func @transform_2(%arg0: i32, %arg1: i32) -> (i32, i32) {
    %c0_i32 = arith.constant 0 : i32
    %c0_i32_0 = arith.constant 0 : i32
    %c0_i32_1 = arith.constant 0 : i32
    return %c0_i32, %c0_i32_0 : i32, i32
  }
  func.func @transform_3(%arg0: i32, %arg1: i32) -> (i32, i32) {
    %c0_i32 = arith.constant 0 : i32
    %c0_i32_0 = arith.constant 0 : i32
    %c0_i32_1 = arith.constant 0 : i32
    return %c0_i32, %c0_i32_0 : i32, i32
  }
  func.func @transform_4(%arg0: i32, %arg1: i32) -> (i32, i32) {
    %c0_i32 = arith.constant 0 : i32
    %c0_i32_0 = arith.constant 0 : i32
    %c0_i32_1 = arith.constant 0 : i32
    return %c0_i32, %c0_i32_0 : i32, i32
  }
  func.func @transform_5(%arg0: i32, %arg1: i32) -> (i32, i32) {
    %c0_i32 = arith.constant 0 : i32
    %c0_i32_0 = arith.constant 0 : i32
    %c0_i32_1 = arith.constant 0 : i32
    return %c0_i32, %c0_i32_0 : i32, i32
  }
  func.func @transform_6(%arg0: i32, %arg1: i32) -> (i32, i32) {
    %c0_i32 = arith.constant 0 : i32
    %c0_i32_0 = arith.constant 0 : i32
    %c0_i32_1 = arith.constant 0 : i32
    return %c0_i32, %c0_i32_0 : i32, i32
  }
  func.func @transform_7(%arg0: i32, %arg1: i32) -> (i32, i32, i32) {
    %c0_i32 = arith.constant 0 : i32
    %c0_i32_0 = arith.constant 0 : i32
    return %arg0, %c0_i32, %arg1 : i32, i32, i32
  }
}

</mosaic_0001>

<llo_original>
// kernel: tpu_custom_call.1
$region0: #{tpu_custom_call.1}
  #allocation0 [shape = 'u32[]', space=smem, size = 0x4, offset = 0x4, fixed_abs, tag = 'smem constant byte address 0x4 - core index']
  #allocation1 [shape = 'u32[144,128]{1,0:T(1,128)}', space=vmem, size = 0x12000, scoped, tag = 'internal scratch']
  %s0 = inlined_call_operand.vmem [shape: f32[2,12,16], index: 0, kind: input, shape index: {}]
  %s1 = inlined_call_operand.vmem [shape: f32[2,12,16], index: 1, kind: input, shape index: {}]
  %s2 = inlined_call_operand.vmem [shape: f32[32,12], index: 2, kind: input, shape index: {}]
  %s3 = inlined_call_operand.vmem [shape: f32[32,12], index: 3, kind: input, shape index: {}]
  %s4 = inlined_call_operand.vmem [shape: f32[32,1], index: 4, kind: input, shape index: {}]
  %s5 = inlined_call_operand.vmem [shape: f32[16,32], index: 5, kind: input, shape index: {}]
  %s6 = inlined_call_operand.vmem [shape: f32[16,1], index: 6, kind: input, shape index: {}]
  %s7 = inlined_call_operand.hbm [shape: f32[2,16,16], index: 7, kind: output, shape index: {}]
  %s8 = sld [smem:[#allocation0]]
  $region61: #{tpu_custom_call.1} parent=0
    _
  %s10 = ssub.s32 1, %s8
  %s11 = scalar_select 0, %s10, %s8
  $region1: #{tpu_custom_call.1} parent=0
    #allocation2 [shape = 'u8[16384]{0}', space=vmem, size = 0x4000, scoped, tag = 'output window, operand 0']
    #allocation3 [shape = 's32[2]{0}', space=sflag, size = 0x8, scoped, tag = 'scoped memory for tpu_custom_call.1']
    %12 = vsyncpa [#allocation3], 0
    %s13 = scalar_lea.sflag [#allocation3], 1
    %14 = vsyncpa %s13, 0
    loop: start=0, step=1, limit=4
    $region2: #{tpu_custom_call.1} parent=1 // loop_pre_header
      _
    $region3: #{tpu_custom_call.1} parent=1 // loop_header
      %s16 = sphi 0, %s20
      %p17 = scmp.ge.s32.totalorder %s16, 4
      %s23 = sphi 0, %s35
      %s24 = sphi 0, %s31
      %s25 = sphi 0, %s23
      %s26 = sphi 0, %s24
      %s27 = sphi 0, %s25
      %s28 = sphi 0, %s26
      %s40 = sphi 0, %s42
      %s43 = sphi 0, %s40
      %s44 = sphi 0, %s43
      %s60 = sphi 0, %s44
      %s68 = sphi 0, %s70
      %s71 = sphi 0, %s68
      %s72 = sphi 0, %s71
      %s88 = sphi 0, %s72
      %s92 = sphi 0, %s92
      %s94 = sphi 0, %s92
      %s95 = sphi 0, %s94
      %s109 = sphi 0, %s95
      %s113 = sphi 0, %s113
      %s115 = sphi 0, %s113
      %s116 = sphi 0, %s115
      %s130 = sphi 0, %s116
      %s134 = sphi 0, %s134
      %s136 = sphi 0, %s134
      %s137 = sphi 0, %s136
      %s151 = sphi 0, %s137
      %s155 = sphi 0, %s155
      %s157 = sphi 0, %s155
      %s158 = sphi 0, %s157
      %s172 = sphi 0, %s158
      %s176 = sphi 0, %s176
      %s178 = sphi 0, %s176
      %s179 = sphi 0, %s178
      %s193 = sphi 0, %s179
      %s201 = sphi 0, %s203
      %s204 = sphi 0, %s201
      %s205 = sphi 0, %s204
      %s221 = sphi 0, %s205
    $region4: #{tpu_custom_call.1} parent=1 // loop_header_branch
      %19 = sbr.rel (%p17) target = $region8
    $region5: #{tpu_custom_call.1} parent=1 // loop_body
      %s21 = ssub.s32 %s16, 1
      %s22 = ssub.s32 %s16, 2
      %s29 = sadd.s32 1, %s24
      %p30 = scmp.ge.s32.totalorder %s29, 1
      %s31 = scalar_select %p30, 0, %s29
      %s32 = sadd.s32 1, %s23
      %s33 = scalar_select %p30, %s32, %s23
      %p34 = scmp.ge.s32.totalorder %s33, 2
      %s35 = scalar_select %p34, 0, %s33
      %s36 = ssub.s32 %s23, %s35
      %s37 = ssub.s32 %s24, %s31
      %s38 = sor.u32 %s36, %s37
      %p39 = scmp.eq.s32.totalorder %s38, 0
      %s41 = sadd.s32 %s40, 1
      %s42 = scalar_select %p39, %s40, %s41
      %p45 = pneg %p39
      %p46 = scmp.eq.s32.totalorder %s16, 1
      %p47 = por %p45, %p46
      %p48 = scmp.ne.s32.totalorder %s40, %s43
      %p49 = scmp.eq.s32.totalorder %s16, 0
      %p50 = por %p48, %p49
      %p51 = scmp.ne.s32.totalorder %s40, %s43
      %p52 = scmp.eq.s32.totalorder %s21, 1
      %p53 = por %p51, %p52
      %p54 = scmp.ne.s32.totalorder %s43, %s44
      %p55 = scmp.eq.s32.totalorder %s21, 0
      %p56 = por %p54, %p55
      %p57 = scmp.ne.s32.totalorder %s43, %s44
      %p58 = scmp.eq.s32.totalorder %s22, 1
      %p59 = por %p57, %p58
      %p61 = scmp.ne.s32.totalorder %s44, %s60
      %p62 = scmp.eq.s32.totalorder %s22, 0
      %p63 = por %p61, %p62
      %s64 = ssub.s32 %s23, %s35
      %s65 = ssub.s32 %s24, %s31
      %s66 = sor.u32 %s64, %s65
      %p67 = scmp.eq.s32.totalorder %s66, 0
      %s69 = sadd.s32 %s68, 1
      %s70 = scalar_select %p67, %s68, %s69
      %p73 = pneg %p67
      %p74 = scmp.eq.s32.totalorder %s16, 1
      %p75 = por %p73, %p74
      %p76 = scmp.ne.s32.totalorder %s68, %s71
      %p77 = scmp.eq.s32.totalorder %s16, 0
      %p78 = por %p76, %p77
      %p79 = scmp.ne.s32.totalorder %s68, %s71
      %p80 = scmp.eq.s32.totalorder %s21, 1
      %p81 = por %p79, %p80
      %p82 = scmp.ne.s32.totalorder %s71, %s72
      %p83 = scmp.eq.s32.totalorder %s21, 0
      %p84 = por %p82, %p83
      %p85 = scmp.ne.s32.totalorder %s71, %s72
      %p86 = scmp.eq.s32.totalorder %s22, 1
      %p87 = por %p85, %p86
      %p89 = scmp.ne.s32.totalorder %s72, %s88
      %p90 = scmp.eq.s32.totalorder %s22, 0
      %p91 = por %p89, %p90
      %s93 = sadd.s32 %s92, 1
      %p96 = scmp.eq.s32.totalorder %s16, 1
      %p97 = scmp.ne.s32.totalorder %s92, %s94
      %p98 = scmp.eq.s32.totalorder %s16, 0
      %p99 = por %p97, %p98
      %p100 = scmp.ne.s32.totalorder %s92, %s94
      %p101 = scmp.eq.s32.totalorder %s21, 1
      %p102 = por %p100, %p101
      %p103 = scmp.ne.s32.totalorder %s94, %s95
      %p104 = scmp.eq.s32.totalorder %s21, 0
      %p105 = por %p103, %p104
      %p106 = scmp.ne.s32.totalorder %s94, %s95
      %p107 = scmp.eq.s32.totalorder %s22, 1
      %p108 = por %p106, %p107
      %p110 = scmp.ne.s32.totalorder %s95, %s109
      %p111 = scmp.eq.s32.totalorder %s22, 0
      %p112 = por %p110, %p111
      %s114 = sadd.s32 %s113, 1
      %p117 = scmp.eq.s32.totalorder %s16, 1
      %p118 = scmp.ne.s32.totalorder %s113, %s115
      %p119 = scmp.eq.s32.totalorder %s16, 0
      %p120 = por %p118, %p119
      %p121 = scmp.ne.s32.totalorder %s113, %s115
      %p122 = scmp.eq.s32.totalorder %s21, 1
      %p123 = por %p121, %p122
      %p124 = scmp.ne.s32.totalorder %s115, %s116
      %p125 = scmp.eq.s32.totalorder %s21, 0
      %p126 = por %p124, %p125
      %p127 = scmp.ne.s32.totalorder %s115, %s116
      %p128 = scmp.eq.s32.totalorder %s22, 1
      %p129 = por %p127, %p128
      %p131 = scmp.ne.s32.totalorder %s116, %s130
      %p132 = scmp.eq.s32.totalorder %s22, 0
      %p133 = por %p131, %p132
      %s135 = sadd.s32 %s134, 1
      %p138 = scmp.eq.s32.totalorder %s16, 1
      %p139 = scmp.ne.s32.totalorder %s134, %s136
      %p140 = scmp.eq.s32.totalorder %s16, 0
      %p141 = por %p139, %p140
      %p142 = scmp.ne.s32.totalorder %s134, %s136
      %p143 = scmp.eq.s32.totalorder %s21, 1
      %p144 = por %p142, %p143
      %p145 = scmp.ne.s32.totalorder %s136, %s137
      %p146 = scmp.eq.s32.totalorder %s21, 0
      %p147 = por %p145, %p146
      %p148 = scmp.ne.s32.totalorder %s136, %s137
      %p149 = scmp.eq.s32.totalorder %s22, 1
      %p150 = por %p148, %p149
      %p152 = scmp.ne.s32.totalorder %s137, %s151
      %p153 = scmp.eq.s32.totalorder %s22, 0
      %p154 = por %p152, %p153
      %s156 = sadd.s32 %s155, 1
      %p159 = scmp.eq.s32.totalorder %s16, 1
      %p160 = scmp.ne.s32.totalorder %s155, %s157
      %p161 = scmp.eq.s32.totalorder %s16, 0
      %p162 = por %p160, %p161
      %p163 = scmp.ne.s32.totalorder %s155, %s157
      %p164 = scmp.eq.s32.totalorder %s21, 1
      %p165 = por %p163, %p164
      %p166 = scmp.ne.s32.totalorder %s157, %s158
      %p167 = scmp.eq.s32.totalorder %s21, 0
      %p168 = por %p166, %p167
      %p169 = scmp.ne.s32.totalorder %s157, %s158
      %p170 = scmp.eq.s32.totalorder %s22, 1
      %p171 = por %p169, %p170
      %p173 = scmp.ne.s32.totalorder %s158, %s172
      %p174 = scmp.eq.s32.totalorder %s22, 0
      %p175 = por %p173, %p174
      %s177 = sadd.s32 %s176, 1
      %p180 = scmp.eq.s32.totalorder %s16, 1
      %p181 = scmp.ne.s32.totalorder %s176, %s178
      %p182 = scmp.eq.s32.totalorder %s16, 0
      %p183 = por %p181, %p182
      %p184 = scmp.ne.s32.totalorder %s176, %s178
      %p185 = scmp.eq.s32.totalorder %s21, 1
      %p186 = por %p184, %p185
      %p187 = scmp.ne.s32.totalorder %s178, %s179
      %p188 = scmp.eq.s32.totalorder %s21, 0
      %p189 = por %p187, %p188
      %p190 = scmp.ne.s32.totalorder %s178, %s179
      %p191 = scmp.eq.s32.totalorder %s22, 1
      %p192 = por %p190, %p191
      %p194 = scmp.ne.s32.totalorder %s179, %s193
      %p195 = scmp.eq.s32.totalorder %s22, 0
      %p196 = por %p194, %p195
      %s197 = ssub.s32 %s23, %s35
      %s198 = ssub.s32 %s24, %s31
      %s199 = sor.u32 %s197, %s198
      %p200 = scmp.eq.s32.totalorder %s199, 0
      %s202 = sadd.s32 %s201, 1
      %s203 = scalar_select %p200, %s201, %s202
      %p206 = pneg %p200
      %p207 = scmp.eq.s32.totalorder %s16, 1
      %p208 = por %p206, %p207
      %p209 = scmp.ne.s32.totalorder %s201, %s204
      %p210 = scmp.eq.s32.totalorder %s16, 0
      %p211 = por %p209, %p210
      %p212 = scmp.ne.s32.totalorder %s201, %s204
      %p213 = scmp.eq.s32.totalorder %s21, 1
      %p214 = por %p212, %p213
      %p215 = scmp.ne.s32.totalorder %s204, %s205
      %p216 = scmp.eq.s32.totalorder %s21, 0
      %p217 = por %p215, %p216
      %p218 = scmp.ne.s32.totalorder %s204, %s205
      %p219 = scmp.eq.s32.totalorder %s22, 1
      %p220 = por %p218, %p219
      %p222 = scmp.ne.s32.totalorder %s205, %s221
      %p223 = scmp.eq.s32.totalorder %s22, 0
      %p224 = por %p222, %p223
      %p225 = scmp.le.s32.totalorder 1, %s16
      %p226 = scmp.lt.s32.totalorder %s16, 3
      %p227 = pnand %p225, %p226
      %p228 = pneg %p227
      // Predicated region
      $region9: #{tpu_custom_call.1} parent=5 // pred_check
        _
      $region10: #{tpu_custom_call.1} parent=5 // pred_check_branch
        %230 = sbr.rel (%p227) target = $region12
      $region11: #{tpu_custom_call.1} parent=5 // pred_region
        %s231 = ssub.s32 %s16, 1
        // Predicated region
        $region13: #{tpu_custom_call.1} parent=11 // pred_check
          %p232 = pneg %p105
        $region14: #{tpu_custom_call.1} parent=11 // pred_check_branch
          %234 = sbr.rel (%p232) target = $region16
        $region15: #{tpu_custom_call.1} parent=11 // pred_region
          _
        $region16: #{tpu_custom_call.1} parent=11 // pred_fallthru
          _
        // Predicated region
        $region17: #{tpu_custom_call.1} parent=11 // pred_check
          %p235 = pneg %p126
        $region18: #{tpu_custom_call.1} parent=11 // pred_check_branch
          %237 = sbr.rel (%p235) target = $region20
        $region19: #{tpu_custom_call.1} parent=11 // pred_region
          _
        $region20: #{tpu_custom_call.1} parent=11 // pred_fallthru
          _
        // Predicated region
        $region21: #{tpu_custom_call.1} parent=11 // pred_check
          %p238 = pneg %p147
        $region22: #{tpu_custom_call.1} parent=11 // pred_check_branch
          %240 = sbr.rel (%p238) target = $region24
        $region23: #{tpu_custom_call.1} parent=11 // pred_region
          _
        $region24: #{tpu_custom_call.1} parent=11 // pred_fallthru
          _
        // Predicated region
        $region25: #{tpu_custom_call.1} parent=11 // pred_check
          %p241 = pneg %p168
        $region26: #{tpu_custom_call.1} parent=11 // pred_check_branch
          %243 = sbr.rel (%p241) target = $region28
        $region27: #{tpu_custom_call.1} parent=11 // pred_region
          _
        $region28: #{tpu_custom_call.1} parent=11 // pred_fallthru
          _
        // Predicated region
        $region29: #{tpu_custom_call.1} parent=11 // pred_check
          %p244 = pneg %p189
        $region30: #{tpu_custom_call.1} parent=11 // pred_check_branch
          %246 = sbr.rel (%p244) target = $region32
        $region31: #{tpu_custom_call.1} parent=11 // pred_region
          _
        $region32: #{tpu_custom_call.1} parent=11 // pred_fallthru
          _
      $region12: #{tpu_custom_call.1} parent=5 // pred_fallthru
        _
      %p247 = scmp.lt.s32.totalorder %s16, 2
      // Predicated region
      $region33: #{tpu_custom_call.1} parent=5 // pred_check
        %p248 = pneg %p247
      $region34: #{tpu_custom_call.1} parent=5 // pred_check_branch
        %250 = sbr.rel (%p248) target = $region36
      $region35: #{tpu_custom_call.1} parent=5 // pred_region
        // Predicated region
        $region37: #{tpu_custom_call.1} parent=35 // pred_check
          %p251 = pneg %p50
        $region38: #{tpu_custom_call.1} parent=35 // pred_check_branch
          %253 = sbr.rel (%p251) target = $region40
        $region39: #{tpu_custom_call.1} parent=35 // pred_region
          %p254 = scmp.lt.s32.totalorder %s23, 1
          %s255 = scalar_select %p254, %s23, 1
          %p256 = scmp.lt.s32.totalorder %s24, 0
          %s257 = scalar_select %p256, %s24, 0
          %s258 = smul.addr %s255, 2
          %s259 = sadd.s32 %s257, %s258
          %s260 = smul.addr %s259, 8
          %s261 = scalar_lea.vmem %s0, %s260
        $region40: #{tpu_custom_call.1} parent=35 // pred_fallthru
          _
        // Predicated region
        $region41: #{tpu_custom_call.1} parent=35 // pred_check
          %p262 = pneg %p78
        $region42: #{tpu_custom_call.1} parent=35 // pred_check_branch
          %264 = sbr.rel (%p262) target = $region44
        $region43: #{tpu_custom_call.1} parent=35 // pred_region
          %p265 = scmp.lt.s32.totalorder %s23, 1
          %s266 = scalar_select %p265, %s23, 1
          %p267 = scmp.lt.s32.totalorder %s24, 0
          %s268 = scalar_select %p267, %s24, 0
          %s269 = smul.addr %s266, 2
          %s270 = sadd.s32 %s268, %s269
          %s271 = smul.addr %s270, 8
          %s272 = scalar_lea.vmem %s1, %s271
        $region44: #{tpu_custom_call.1} parent=35 // pred_fallthru
          _
      $region36: #{tpu_custom_call.1} parent=5 // pred_fallthru
        _
      %p273 = scmp.le.s32.totalorder 1, %s16
      %p274 = scmp.lt.s32.totalorder %s16, 3
      %p275 = pnand %p273, %p274
      %p276 = pneg %p275
      // Predicated region
      $region45: #{tpu_custom_call.1} parent=5 // pred_check
        _
      $region46: #{tpu_custom_call.1} parent=5 // pred_check_branch
        %278 = sbr.rel (%p275) target = $region48
      $region47: #{tpu_custom_call.1} parent=5 // pred_region
        %s279 = ssub.s32 %s16, 1
        %p280 = scmp.lt.s32.totalorder %s25, 1
        %s281 = scalar_select %p280, %s25, 1
        %p282 = scmp.lt.s32.totalorder %s26, 0
        %s283 = scalar_select %p282, %s26, 0
        %s284 = smul.addr %s281, 2
        %s285 = sadd.s32 %s283, %s284
        %s286 = smul.addr %s285, 8
        %s287 = scalar_lea.vmem %s0, %s286
        %p288 = pneg %p56
        %p289 = pneg %p53
        %p290 = scmp.lt.s32.totalorder %s25, 1
        %s291 = scalar_select %p290, %s25, 1
        %p292 = scmp.lt.s32.totalorder %s26, 0
        %s293 = scalar_select %p292, %s26, 0
        %s294 = smul.addr %s291, 2
        %s295 = sadd.s32 %s293, %s294
        %s296 = smul.addr %s295, 8
        %s297 = scalar_lea.vmem %s1, %s296
        %p298 = pneg %p84
        %p299 = pneg %p81
        %p300 = pneg %p105
        %p301 = pneg %p102
        %p302 = pneg %p126
        %p303 = pneg %p123
        %p304 = pneg %p147
        %p305 = pneg %p144
        %p306 = pneg %p168
        %p307 = pneg %p165
        %p308 = pneg %p189
        %p309 = pneg %p186
        %p310 = pneg %p217
        %p311 = pneg %p214
        %s312 = sand.u32 %s204, 1
        %s313 = scalar_lea.sflag [#allocation3], %s312
        %s314 = sand.u32 %s204, 1
        %s315 = smul.addr %s314, 16
        %s316 = scalar_lea.vmem [#allocation2], %s315
        %p317 = scmp.lt.s32.totalorder %s25, 1
        %s318 = scalar_select %p317, %s25, 1
        %p319 = scmp.lt.s32.totalorder %s26, 0
        %s320 = scalar_select %p319, %s26, 0
        %s321 = smul.addr %s318, 2
        %s322 = sadd.s32 %s320, %s321
        %s323 = smul.addr %s322, 8
        %s324 = scalar_lea.vmem %s0, %s323
        %p325 = scmp.lt.s32.totalorder %s25, 1
        %s326 = scalar_select %p325, %s25, 1
        %p327 = scmp.lt.s32.totalorder %s26, 0
        %s328 = scalar_select %p327, %s26, 0
        %s329 = smul.addr %s326, 2
        %s330 = sadd.s32 %s328, %s329
        %s331 = smul.addr %s330, 8
        %s332 = scalar_lea.vmem %s1, %s331
        %v333 = vld [vmem:[%s2] sm:$0xff]
        %v334 = vld [vmem:[%s2 + $0x8] sm:$0xff]
        %v335 = vld [vmem:[%s2 + $0x10] sm:$0xff]
        %v336 = vld [vmem:[%s2 + $0x18] sm:$0xff]
        %v337 = vld [vmem:[%s324] sm:$0xff]
        %v338 = vld [vmem:[%s324 + $0x8] sm:$0xf]
        %v339 = vld [vmem:[%s3] sm:$0xff]
        %v340 = vld [vmem:[%s3 + $0x8] sm:$0xff]
        %v341 = vld [vmem:[%s3 + $0x10] sm:$0xff]
        %v342 = vld [vmem:[%s3 + $0x18] sm:$0xff]
        %v343 = vld [vmem:[%s332] sm:$0xff]
        %v344 = vld [vmem:[%s332 + $0x8] sm:$0xf]
        %vm345 = vcmask 97280
        %v347 = vsel %vm345, %v339, 0
        %v350 = vsel %vm345, %v340, 0
        %v353 = vsel %vm345, %v341, 0
        %v356 = vsel %vm345, %v342, 0
        %vm358 = vcmask 1043456
        %v360 = vsel %vm358, %v344, 0
        %362 = vmatprep.subr.mxu0 0.0
        %363 = vmatpush1.msra.mxu0 0.0
        %364 = vmatprep.subr.mxu0 0.0
        %365 = vmatpush1.msra.mxu0 0.0
        %366 = vmatprep.subr.mxu0 0.0
        %367 = vmatpush1.msra.mxu0 0.0
        %368 = vmatprep.subr.mxu0 0.0
        %369 = vmatpush1.msra.mxu0 0.0
        %370 = vmatprep.subr.mxu0 0.0
        %371 = vmatpush1.msra.mxu0 0.0
        %372 = vmatprep.subr.mxu0 0.0
        %373 = vmatpush1.msra.mxu0 0.0
        %374 = vmatprep.subr.mxu0 0.0
        %375 = vmatpush1.msra.mxu0 0.0
        %376 = vmatprep.subr.mxu0 0.0
        %377 = vmatpush1.msra.mxu0 0.0
        %378 = vmatprep.subr.mxu0 0.0
        %379 = vmatpush1.msra.mxu0 0.0
        %380 = vmatprep.subr.mxu0 0.0
        %381 = vmatpush1.msra.mxu0 0.0
        %382 = vmatprep.subr.mxu0 0.0
        %383 = vmatpush1.msra.mxu0 0.0
        %384 = vmatprep.subr.mxu0 0.0
        %385 = vmatpush1.msra.mxu0 0.0
        %386 = vmatprep.subr.mxu0 0.0
        %387 = vmatpush1.msra.mxu0 0.0
        %388 = vmatprep.subr.mxu0 0.0
        %389 = vmatpush1.msra.mxu0 0.0
        %390 = vmatprep.subr.mxu0 0.0
        %391 = vmatpush1.msra.mxu0 %v360
        %392 = vmatprep.subr.mxu0 0.0
        %393 = vmatpush1.msra.mxu0 %v343
        %394 = vmatprep.subr.mxu0 0.0
        %395 = vmatpush2.msra.mxu0 0.0
        %396 = vmatprep.subr.mxu0 0.0
        %397 = vmatpush2.msra.mxu0 0.0
        %398 = vmatprep.subr.mxu0 0.0
        %399 = vmatpush2.msra.mxu0 0.0
        %400 = vmatprep.subr.mxu0 0.0
        %401 = vmatpush2.msra.mxu0 0.0
        %402 = vmatprep.subr.mxu0 0.0
        %403 = vmatpush2.msra.mxu0 0.0
        %404 = vmatprep.subr.mxu0 0.0
        %405 = vmatpush2.msra.mxu0 0.0
        %406 = vmatprep.subr.mxu0 0.0
        %407 = vmatpush2.msra.mxu0 0.0
        %408 = vmatprep.subr.mxu0 0.0
        %409 = vmatpush2.msra.mxu0 0.0
        %410 = vmatprep.subr.mxu0 0.0
        %411 = vmatpush2.msra.mxu0 0.0
        %412 = vmatprep.subr.mxu0 0.0
        %413 = vmatpush2.msra.mxu0 0.0
        %414 = vmatprep.subr.mxu0 0.0
        %415 = vmatpush2.msra.mxu0 0.0
        %416 = vmatprep.subr.mxu0 0.0
        %417 = vmatpush2.msra.mxu0 0.0
        %418 = vmatprep.subr.mxu0 0.0
        %419 = vmatpush2.msra.mxu0 0.0
        %420 = vmatprep.subr.mxu0 0.0
        %421 = vmatpush2.msra.mxu0 0.0
        %422 = vmatprep.subr.mxu0 0.0
        %423 = vmatpush2.msra.mxu0 0.0
        %424 = vmatprep.subr.mxu0 0.0
        %425 = vmatpush2.msra.mxu0 0.0
        %426 = vmatprep.mubr.f32.mxu0 0.0
        %427 = vmatmul.mubr.f32.gmra.mxu0 %v347
        %v428 = vpop.f32.mrf.mxu0
        %v429 = vadd.f32 0.0, %v428
        %v430 = vpop.f32.mrf.mxu0
        %431 = vmatprep.mubr.f32.mxu0 0.0
        %432 = vmatmul.mubr.f32.gmra.mxu0 %v350
        %v433 = vpop.f32.mrf.mxu0
        %v434 = vadd.f32 0.0, %v433
        %v435 = vpop.f32.mrf.mxu0
        %436 = vmatprep.mubr.f32.mxu0 0.0
        %437 = vmatmul.mubr.f32.gmra.mxu0 %v353
        %v438 = vpop.f32.mrf.mxu0
        %v439 = vadd.f32 0.0, %v438
        %v440 = vpop.f32.mrf.mxu0
        %441 = vmatprep.mubr.f32.mxu0 0.0
        %442 = vmatmul.mubr.f32.gmra.mxu0 %v356
        %v443 = vpop.f32.mrf.mxu0
        %v444 = vadd.f32 0.0, %v443
        %v445 = vpop.f32.mrf.mxu0
        %446 = vdwg.mxu0
        %v448 = vsel %vm345, %v333, 0
        %v451 = vsel %vm345, %v334, 0
        %v454 = vsel %vm345, %v335, 0
        %v457 = vsel %vm345, %v336, 0
        %v460 = vsel %vm358, %v338, 0
        %462 = vmatprep.subr.mxu0 0.0
        %463 = vmatpush1.msra.mxu0 0.0
        %464 = vmatprep.subr.mxu0 0.0
        %465 = vmatpush1.msra.mxu0 0.0
        %466 = vmatprep.subr.mxu0 0.0
        %467 = vmatpush1.msra.mxu0 0.0
        %468 = vmatprep.subr.mxu0 0.0
        %469 = vmatpush1.msra.mxu0 0.0
        %470 = vmatprep.subr.mxu0 0.0
        %471 = vmatpush1.msra.mxu0 0.0
        %472 = vmatprep.subr.mxu0 0.0
        %473 = vmatpush1.msra.mxu0 0.0
        %474 = vmatprep.subr.mxu0 0.0
        %475 = vmatpush1.msra.mxu0 0.0
        %476 = vmatprep.subr.mxu0 0.0
        %477 = vmatpush1.msra.mxu0 0.0
        %478 = vmatprep.subr.mxu0 0.0
        %479 = vmatpush1.msra.mxu0 0.0
        %480 = vmatprep.subr.mxu0 0.0
        %481 = vmatpush1.msra.mxu0 0.0
        %482 = vmatprep.subr.mxu0 0.0
        %483 = vmatpush1.msra.mxu0 0.0
        %484 = vmatprep.subr.mxu0 0.0
        %485 = vmatpush1.msra.mxu0 0.0
        %486 = vmatprep.subr.mxu0 0.0
        %487 = vmatpush1.msra.mxu0 0.0
        %488 = vmatprep.subr.mxu0 0.0
        %489 = vmatpush1.msra.mxu0 0.0
        %490 = vmatprep.subr.mxu0 0.0
        %491 = vmatpush1.msra.mxu0 %v460
        %492 = vmatprep.subr.mxu0 0.0
        %493 = vmatpush1.msra.mxu0 %v337
        %494 = vmatprep.subr.mxu0 0.0
        %495 = vmatpush2.msra.mxu0 0.0
        %496 = vmatprep.subr.mxu0 0.0
        %497 = vmatpush2.msra.mxu0 0.0
        %498 = vmatprep.subr.mxu0 0.0
        %499 = vmatpush2.msra.mxu0 0.0
        %500 = vmatprep.subr.mxu0 0.0
        %501 = vmatpush2.msra.mxu0 0.0
        %502 = vmatprep.subr.mxu0 0.0
        %503 = vmatpush2.msra.mxu0 0.0
        %504 = vmatprep.subr.mxu0 0.0
        %505 = vmatpush2.msra.mxu0 0.0
        %506 = vmatprep.subr.mxu0 0.0
        %507 = vmatpush2.msra.mxu0 0.0
        %508 = vmatprep.subr.mxu0 0.0
        %509 = vmatpush2.msra.mxu0 0.0
        %510 = vmatprep.subr.mxu0 0.0
        %511 = vmatpush2.msra.mxu0 0.0
        %512 = vmatprep.subr.mxu0 0.0
        %513 = vmatpush2.msra.mxu0 0.0
        %514 = vmatprep.subr.mxu0 0.0
        %515 = vmatpush2.msra.mxu0 0.0
        %516 = vmatprep.subr.mxu0 0.0
        %517 = vmatpush2.msra.mxu0 0.0
        %518 = vmatprep.subr.mxu0 0.0
        %519 = vmatpush2.msra.mxu0 0.0
        %520 = vmatprep.subr.mxu0 0.0
        %521 = vmatpush2.msra.mxu0 0.0
        %522 = vmatprep.subr.mxu0 0.0
        %523 = vmatpush2.msra.mxu0 0.0
        %524 = vmatprep.subr.mxu0 0.0
        %525 = vmatpush2.msra.mxu0 0.0
        %526 = vmatprep.mubr.f32.mxu0 0.0
        %527 = vmatmul.mubr.f32.gmra.mxu0 %v448
        %v528 = vpop.f32.mrf.mxu0
        %v529 = vadd.f32 %v429, %v528
        %v530 = vpop.f32.mrf.mxu0
        %531 = vmatprep.mubr.f32.mxu0 0.0
        %532 = vmatmul.mubr.f32.gmra.mxu0 %v451
        %v533 = vpop.f32.mrf.mxu0
        %v534 = vadd.f32 %v434, %v533
        %v535 = vpop.f32.mrf.mxu0
        %536 = vmatprep.mubr.f32.mxu0 0.0
        %537 = vmatmul.mubr.f32.gmra.mxu0 %v454
        %v538 = vpop.f32.mrf.mxu0
        %v539 = vadd.f32 %v439, %v538
        %v540 = vpop.f32.mrf.mxu0
        %541 = vmatprep.mubr.f32.mxu0 0.0
        %542 = vmatmul.mubr.f32.gmra.mxu0 %v457
        %v543 = vpop.f32.mrf.mxu0
        %v544 = vadd.f32 %v444, %v543
        %v545 = vpop.f32.mrf.mxu0
        %546 = vdwg.mxu0
        %v547 = vld [vmem:[%s4] sm:$0xff]
        %v548 = vld [vmem:[%s4 + $0x8] sm:$0xff]
        %v549 = vld [vmem:[%s4 + $0x10] sm:$0xff]
        %v550 = vld [vmem:[%s4 + $0x18] sm:$0xff]
        %552 = vset.pattern.permute.xlu0 0
        %553 = vperm.xlu0 %552, %v547
        %v554 = vpop.permute.xlu0 %553
        %557 = vset.pattern.permute.xlu0 0
        %558 = vperm.xlu0 %557, %v548
        %v559 = vpop.permute.xlu0 %558
        %562 = vset.pattern.permute.xlu0 0
        %563 = vperm.xlu0 %562, %v549
        %v564 = vpop.permute.xlu0 %563
        %567 = vset.pattern.permute.xlu0 0
        %568 = vperm.xlu0 %567, %v550
        %v569 = vpop.permute.xlu0 %568
        %v571 = vadd.f32 %v529, %v554
        %v572 = vadd.f32 %v534, %v559
        %v573 = vadd.f32 %v539, %v564
        %v574 = vadd.f32 %v544, %v569
        %v575 = vmax.f32 %v571, 0.0
        %v576 = vmax.f32 %v572, 0.0
        %v577 = vmax.f32 %v573, 0.0
        %v578 = vmax.f32 %v574, 0.0
        %v579 = vld [vmem:[%s5] sm:$0xff]
        %v580 = vld [vmem:[%s5 + $0x8] sm:$0xff]
        %v581 = vld [vmem:[%s6] sm:$0xff]
        %v582 = vld [vmem:[%s6 + $0x8] sm:$0xff]
        %584 = vset.pattern.permute.xlu0 0
        %585 = vperm.xlu0 %584, %v581
        %v586 = vpop.permute.xlu0 %585
        %589 = vset.pattern.permute.xlu0 0
        %590 = vperm.xlu0 %589, %v582
        %v591 = vpop.permute.xlu0 %590
        %vm593 = vcmask 261120
        %v595 = vsel %vm593, %v579, 0
        %v598 = vsel %vm593, %v580, 0
        %600 = vmatprep.subr.mxu0 0.0
        %601 = vmatpush1.msra.mxu0 0.0
        %602 = vmatprep.subr.mxu0 0.0
        %603 = vmatpush1.msra.mxu0 0.0
        %604 = vmatprep.subr.mxu0 0.0
        %605 = vmatpush1.msra.mxu0 0.0
        %606 = vmatprep.subr.mxu0 0.0
        %607 = vmatpush1.msra.mxu0 0.0
        %608 = vmatprep.subr.mxu0 0.0
        %609 = vmatpush1.msra.mxu0 0.0
        %610 = vmatprep.subr.mxu0 0.0
        %611 = vmatpush1.msra.mxu0 0.0
        %612 = vmatprep.subr.mxu0 0.0
        %613 = vmatpush1.msra.mxu0 0.0
        %614 = vmatprep.subr.mxu0 0.0
        %615 = vmatpush1.msra.mxu0 0.0
        %616 = vmatprep.subr.mxu0 0.0
        %617 = vmatpush1.msra.mxu0 0.0
        %618 = vmatprep.subr.mxu0 0.0
        %619 = vmatpush1.msra.mxu0 0.0
        %620 = vmatprep.subr.mxu0 0.0
        %621 = vmatpush1.msra.mxu0 0.0
        %622 = vmatprep.subr.mxu0 0.0
        %623 = vmatpush1.msra.mxu0 0.0
        %624 = vmatprep.subr.mxu0 0.0
        %625 = vmatpush1.msra.mxu0 %v578
        %626 = vmatprep.subr.mxu0 0.0
        %627 = vmatpush1.msra.mxu0 %v577
        %628 = vmatprep.subr.mxu0 0.0
        %629 = vmatpush1.msra.mxu0 %v576
        %630 = vmatprep.subr.mxu0 0.0
        %631 = vmatpush1.msra.mxu0 %v575
        %632 = vmatprep.subr.mxu0 0.0
        %633 = vmatpush2.msra.mxu0 0.0
        %634 = vmatprep.subr.mxu0 0.0
        %635 = vmatpush2.msra.mxu0 0.0
        %636 = vmatprep.subr.mxu0 0.0
        %637 = vmatpush2.msra.mxu0 0.0
        %638 = vmatprep.subr.mxu0 0.0
        %639 = vmatpush2.msra.mxu0 0.0
        %640 = vmatprep.subr.mxu0 0.0
        %641 = vmatpush2.msra.mxu0 0.0
        %642 = vmatprep.subr.mxu0 0.0
        %643 = vmatpush2.msra.mxu0 0.0
        %644 = vmatprep.subr.mxu0 0.0
        %645 = vmatpush2.msra.mxu0 0.0
        %646 = vmatprep.subr.mxu0 0.0
        %647 = vmatpush2.msra.mxu0 0.0
        %648 = vmatprep.subr.mxu0 0.0
        %649 = vmatpush2.msra.mxu0 0.0
        %650 = vmatprep.subr.mxu0 0.0
        %651 = vmatpush2.msra.mxu0 0.0
        %652 = vmatprep.subr.mxu0 0.0
        %653 = vmatpush2.msra.mxu0 0.0
        %654 = vmatprep.subr.mxu0 0.0
        %655 = vmatpush2.msra.mxu0 0.0
        %656 = vmatprep.subr.mxu0 0.0
        %657 = vmatpush2.msra.mxu0 0.0
        %658 = vmatprep.subr.mxu0 0.0
        %659 = vmatpush2.msra.mxu0 0.0
        %660 = vmatprep.subr.mxu0 0.0
        %661 = vmatpush2.msra.mxu0 0.0
        %662 = vmatprep.subr.mxu0 0.0
        %663 = vmatpush2.msra.mxu0 0.0
        %664 = vmatprep.mubr.f32.mxu0 0.0
        %665 = vmatmul.mubr.f32.gmra.mxu0 %v595
        %v666 = vpop.f32.mrf.mxu0
        %v667 = vadd.f32 %v586, %v666
        %v668 = vpop.f32.mrf.mxu0
        %669 = vmatprep.mubr.f32.mxu0 0.0
        %670 = vmatmul.mubr.f32.gmra.mxu0 %v598
        %v671 = vpop.f32.mrf.mxu0
        %v672 = vadd.f32 %v591, %v671
        %v673 = vpop.f32.mrf.mxu0
        %674 = vdwg.mxu0
        %v675 = vmax.f32 %v667, 0.0
        %v676 = vmax.f32 %v672, 0.0
        %vm677 = vcmask 130048
        %678 = vst.msk [vmem:[%s316] sm:$0xff] %vm677, %v675
        %679 = vst.msk [vmem:[%s316 + $0x8] sm:$0xff] %vm677, %v676
        %s680 = sand.u32 %s204, 1
        %s681 = scalar_lea.sflag [#allocation3], %s680
        %s682 = sand.u32 %s204, 1
        %s683 = smul.addr %s682, 16
        %s684 = scalar_lea.vmem [#allocation2], %s683
        // Predicated region
        $region49: #{tpu_custom_call.1} parent=47 // pred_check
          %p685 = pneg %p214
        $region50: #{tpu_custom_call.1} parent=47 // pred_check_branch
          %687 = sbr.rel (%p685) target = $region52
        $region51: #{tpu_custom_call.1} parent=47 // pred_region
          %s689 = ssub.s32 256, 256
          %690 = vsyncadd %s681, %s689
          %s691 = smul.addr %s25, 2
          %s692 = sadd.s32 %s26, %s691
          %s693 = smul.addr %s692, 128
          %s694 = scalar_lea.hbm %s7, %s693
          %s695 = sshll.u32 %s684, 4
          %s696 = int_to_ptr.vmem [resolvable:$true] %s695
          %701 = dma.vmem_to_hbm [thread:$0]  %s696, 256, %s694, %s681, 128, 128, 8
        $region52: #{tpu_custom_call.1} parent=47 // pred_fallthru
          _
      $region48: #{tpu_custom_call.1} parent=5 // pred_fallthru
        _
      %p702 = scmp.le.s32.totalorder 2, %s16
      // Predicated region
      $region53: #{tpu_custom_call.1} parent=5 // pred_check
        %p703 = pneg %p702
      $region54: #{tpu_custom_call.1} parent=5 // pred_check_branch
        %705 = sbr.rel (%p703) target = $region56
      $region55: #{tpu_custom_call.1} parent=5 // pred_region
        %s706 = ssub.s32 %s16, 2
        // Predicated region
        $region57: #{tpu_custom_call.1} parent=55 // pred_check
          %p707 = pneg %p220
        $region58: #{tpu_custom_call.1} parent=55 // pred_check_branch
          %709 = sbr.rel (%p707) target = $region60
        $region59: #{tpu_custom_call.1} parent=55 // pred_region
          %s710 = sand.u32 %s205, 1
          %s711 = scalar_lea.sflag [#allocation3], %s710
          %s712 = sand.u32 %s205, 1
          %s713 = smul.addr %s712, 16
          %s714 = scalar_lea.vmem [#allocation2], %s713
          %715 = dma.done %s711, 256
        $region60: #{tpu_custom_call.1} parent=55 // pred_fallthru
          _
      $region56: #{tpu_custom_call.1} parent=5 // pred_fallthru
        _
    $region6: #{tpu_custom_call.1} parent=1 // loop_footer
      %s20 = sadd.s32 1, %s16
    $region7: #{tpu_custom_call.1} parent=1 // loop_footer_branch
      %15 = sbr.rel target = $region3
    $region8: #{tpu_custom_call.1} parent=1 // loop_exit
      _
    %716 = vsyncpa [#allocation3], 1
    %s717 = scalar_lea.sflag [#allocation3], 1
    %718 = vsyncpa %s717, 1

</llo_original>
